<compile_context>
chip_gen: v7x
topology: tpu7x:2x2x1
jax: 0.10.0
libtpu: 0.0.40
codegen_flags: <defaults>
</compile_context>

<pallas_src>
import functools

import jax
import jax.numpy as jnp
from jax.experimental import pallas as pl
from jax.experimental.pallas import tpu as pltpu


# ----------------------------------------------------------------------------
# Fused kernel: chain of Linear (+ ReLU for all but the last) layers.
# refs = (x_ref, w0, b0, w1, b1, ..., w{n-1}, b{n-1}, o_ref)
# Weights are pre-transposed (Din, Dout); biases are (1, Dout).
# The last layer's weight/bias are already zero-padded to a lane-dense Dout.
# ----------------------------------------------------------------------------
def _fused_encoder_kernel(x_ref, *refs, n_layers: int):
    o_ref = refs[-1]
    wb_refs = refs[:-1]

    y = x_ref[...]
    act_dtype = y.dtype
    for i in range(n_layers):
        w = wb_refs[2 * i][...]
        b = wb_refs[2 * i + 1][...]
        # MXU matmul with f32 accumulation; bias + ReLU on the f32 accumulator.
        acc = jnp.dot(y, w, preferred_element_type=jnp.float32)
        acc = acc + b.astype(jnp.float32)
        if i < n_layers - 1:
            acc = jnp.maximum(acc, 0.0)
            y = acc.astype(act_dtype)  # bf16 between layers -> single MXU pass
        else:
            y = acc
    o_ref[...] = y.astype(o_ref.dtype)


# ----------------------------------------------------------------------------
# Tile-size selection.
# ----------------------------------------------------------------------------
def _round_up(x: int, m: int) -> int:
    return ((x + m - 1) // m) * m


def _round_down(x: int, m: int) -> int:
    return (x // m) * m


# Keep a single grid step's VMEM well under v5e's 16 MiB default scoped VMEM
# (v6e/v7x defaults are 32 MiB; v7x physical VMEM is only 64 MiB per TC).
_VMEM_TILE_BUDGET_BYTES = 12 * 1024 * 1024
_MAX_BATCH_TILE = 4096


def _pick_batch_tile(B: int, Din: int, Dout_pad: int, Dmax: int,
                     act_bytes: int):
    """Returns (batch_tile, num_tiles) for cdiv-based batch tiling."""
    # Per-row VMEM: double-buffered x tile + double-buffered out tile
    # + ~2 spilled f32 intermediates of the widest hidden layer.
    per_row = 2 * Din * act_bytes + 2 * Dout_pad * act_bytes + 2 * Dmax * 4
    bt = _VMEM_TILE_BUDGET_BYTES // max(per_row, 1)
    bt = min(bt, _MAX_BATCH_TILE)
    bt = max(_round_down(bt, 8), 8)

    if bt >= B:
        return B, 1  # single whole-batch block (block == full array dim is legal)

    num_tiles = pl.cdiv(B, bt)
    # v7x megacore: prefer an even number of tiles so both TensorCores get the
    # same number of grid steps (no effect on v5e/v6e, which have 1 TC).
    if num_tiles > 1 and num_tiles % 2 == 1:
        bt_even = _round_up(pl.cdiv(B, num_tiles + 1), 8)
        if 8 <= bt_even < B:
            bt = bt_even
            num_tiles = pl.cdiv(B, bt)
    return bt, num_tiles


# ----------------------------------------------------------------------------
# Public forward (jit this at the call site).
# ----------------------------------------------------------------------------
def general_linear_relu_encoder(x, params):
    """Fused forward: ReLU(Linear(...)) for all but the last layer.

    params: list of (w_t, b2) with w_t of shape (Din, Dout) (pre-transposed)
            and b2 of shape (1, Dout).
    Returns an array of shape (B, Dout_last) in x.dtype.
    """
    B, Din = x.shape
    n_layers = len(params)
    Dout_last = params[-1][0].shape[1]
    act_bytes = jnp.dtype(x.dtype).itemsize

    # Lane-dense output: zero-pad the last layer's columns to a multiple of 128
    # so the output BlockSpec uses unmasked full-lane stores.
    Dout_pad = max(128, _round_up(Dout_last, 128))
    prepped = list(params)
    if Dout_pad != Dout_last:
        wt_last, b_last = params[-1]
        wt_last = jnp.pad(wt_last, ((0, 0), (0, Dout_pad - Dout_last)))
        b_last = jnp.pad(b_last, ((0, 0), (0, Dout_pad - Dout_last)))
        prepped[-1] = (wt_last, b_last)

    flat_args = []
    for (wt, b2) in prepped:
        flat_args.append(wt)
        flat_args.append(b2)

    Dmax = max(max(wt.shape) for (wt, _) in prepped)
    bt, num_tiles = _pick_batch_tile(B, Din, Dout_pad, Dmax, act_bytes)

    # BlockSpecs: x / out stream over the batch axis; weights & biases are
    # resident (constant (0, 0) index maps), they total only a few tens of KB.
    in_specs = [pl.BlockSpec((bt, Din), lambda i: (i, 0))]
    for (wt, b2) in prepped:
        din, dout = wt.shape
        in_specs.append(pl.BlockSpec((din, dout), lambda i: (0, 0)))
        in_specs.append(pl.BlockSpec((1, dout), lambda i: (0, 0)))
    out_specs = pl.BlockSpec((bt, Dout_pad), lambda i: (i, 0))

    flops = 2 * B * sum(wt.shape[0] * wt.shape[1] for (wt, _) in prepped)
    bytes_accessed = (
        B * (Din + Dout_pad) * act_bytes
        + sum(wt.size * jnp.dtype(wt.dtype).itemsize
              + b2.size * jnp.dtype(b2.dtype).itemsize
              for (wt, b2) in prepped))

    kernel = functools.partial(_fused_encoder_kernel, n_layers=n_layers)
    out_padded = pl.pallas_call(
        kernel,
        out_shape=jax.ShapeDtypeStruct((B, Dout_pad), x.dtype),
        grid=(num_tiles,),
        in_specs=in_specs,
        out_specs=out_specs,
        compiler_params=pltpu.CompilerParams(
            dimension_semantics=("parallel",)),  # batch shards across TCs (v7x)
        cost_estimate=pl.CostEstimate(
            flops=flops, transcendentals=0, bytes_accessed=bytes_accessed),
    )(x, *flat_args)

    if Dout_pad != Dout_last:
        out_padded = out_padded[:, :Dout_last]
    return out_padded


encoder_forward = jax.jit(general_linear_relu_encoder)


# ----------------------------------------------------------------------------
# Parameter construction (mirrors GeneralLinearReluEncoder.__init__ sizes).
# ----------------------------------------------------------------------------
def encoder_layer_dims(input_dim: int, latent_dim: int, n_layers: int = 4):
    transition_step = (input_dim - latent_dim) // n_layers
    remainder = (input_dim - latent_dim) % n_layers
    start = input_dim - (transition_step + remainder)
    n_f = lambda i: start - transition_step * i
    dims = [(input_dim, start)]
    for i in range(n_layers - 1):
        dims.append((n_f(i), n_f(i + 1)))
    return dims  # list of (in_features, out_features)


def init_params(key, dims, dtype=jnp.bfloat16):
    """PyTorch-Linear-style init (uniform +/- 1/sqrt(fan_in)), stored
    pre-transposed: W as (Din, Dout), b as (1, Dout), in `dtype` (bf16 by
    default so the MXU runs single-pass bf16 matmuls with f32 accumulation)."""
    params = []
    for (din, dout) in dims:
        key, kw, kb = jax.random.split(key, 3)
        bound = 1.0 / float(din) ** 0.5
        wt = jax.random.uniform(kw, (din, dout), jnp.float32, -bound, bound)
        b2 = jax.random.uniform(kb, (1, dout), jnp.float32, -bound, bound)
        params.append((wt.astype(dtype), b2.astype(dtype)))
    return params


def reference_forward(x, params):
    """Pure-JAX reference mirroring the kernel's numerics (bf16 operands,
    f32 accumulation, bf16 recast between layers)."""
    n = len(params)
    y = x
    for idx, (wt, b2) in enumerate(params):
        acc = jnp.dot(y, wt, preferred_element_type=jnp.float32)
        acc = acc + b2.astype(jnp.float32)
        if idx < n - 1:
            acc = jnp.maximum(acc, 0.0)
            y = acc.astype(x.dtype)
        else:
            y = acc
    return y.astype(x.dtype)


if __name__ == "__main__":
    input_dim, latent_dim, n_layers = 64, 32, 4
    batch = 8

    dims = encoder_layer_dims(input_dim, latent_dim, n_layers)
    # dims == [(64, 56), (56, 48), (48, 40), (40, 32)]

    key = jax.random.PRNGKey(0)
    key, kx = jax.random.split(key)
    x = jax.random.normal(kx, (batch, input_dim), jnp.float32).astype(jnp.bfloat16)
    params = init_params(key, dims, dtype=jnp.bfloat16)

    out = encoder_forward(x, params)
    out = jax.block_until_ready(out)

    ref = reference_forward(x, params)
    assert out.shape == (batch, latent_dim), out.shape
    out_f32 = out.astype(jnp.float32)
    ref_f32 = ref.astype(jnp.float32)
    assert bool(jnp.all(jnp.isfinite(out_f32))), "non-finite output"
    assert jnp.allclose(out_f32, ref_f32, atol=1e-2, rtol=1e-2), "mismatch vs reference"

    print("KERNEL_OK")
</pallas_src>

<mosaic_0001>
module attributes {stable_mosaic.version = 11 : i64} {
  func.func @_fused_encoder_kernel(%arg0: i32, %arg1: memref<8x64xbf16, #tpu.memory_space<vmem>>, %arg2: memref<64x56xbf16, #tpu.memory_space<vmem>>, %arg3: memref<1x56xbf16, #tpu.memory_space<vmem>>, %arg4: memref<56x48xbf16, #tpu.memory_space<vmem>>, %arg5: memref<1x48xbf16, #tpu.memory_space<vmem>>, %arg6: memref<48x40xbf16, #tpu.memory_space<vmem>>, %arg7: memref<1x40xbf16, #tpu.memory_space<vmem>>, %arg8: memref<40x128xbf16, #tpu.memory_space<vmem>>, %arg9: memref<1x128xbf16, #tpu.memory_space<vmem>>, %arg10: memref<8x128xbf16, #tpu.memory_space<vmem>>) attributes {dimension_semantics = [#tpu.dimension_semantics<parallel>], iteration_bounds = array<i64: 1>, scalar_prefetch = 0 : i64, scratch_operands = 0 : i64, tpu.core_type = #tpu.core_type<tc>, window_params = [{transform_indices = @transform_0, window_bounds = array<i64: 8, 64>}, {pipeline_mode = #tpu.pipeline_mode<synchronous>, transform_indices = @transform_1, window_bounds = array<i64: 64, 56>}, {pipeline_mode = #tpu.pipeline_mode<synchronous>, transform_indices = @transform_2, window_bounds = array<i64: 1, 56>}, {pipeline_mode = #tpu.pipeline_mode<synchronous>, transform_indices = @transform_3, window_bounds = array<i64: 56, 48>}, {pipeline_mode = #tpu.pipeline_mode<synchronous>, transform_indices = @transform_4, window_bounds = array<i64: 1, 48>}, {pipeline_mode = #tpu.pipeline_mode<synchronous>, transform_indices = @transform_5, window_bounds = array<i64: 48, 40>}, {pipeline_mode = #tpu.pipeline_mode<synchronous>, transform_indices = @transform_6, window_bounds = array<i64: 1, 40>}, {pipeline_mode = #tpu.pipeline_mode<synchronous>, transform_indices = @transform_7, window_bounds = array<i64: 40, 128>}, {pipeline_mode = #tpu.pipeline_mode<synchronous>, transform_indices = @transform_8, window_bounds = array<i64: 1, 128>}, {transform_indices = @transform_9, window_bounds = array<i64: 8, 128>}]} {
    %c0 = arith.constant 0 : index
    %c0_0 = arith.constant 0 : index
    %0 = vector.load %arg1[%c0, %c0_0] : memref<8x64xbf16, #tpu.memory_space<vmem>>, vector<8x64xbf16>
    %c0_1 = arith.constant 0 : index
    %c0_2 = arith.constant 0 : index
    %1 = vector.load %arg2[%c0_1, %c0_2] : memref<64x56xbf16, #tpu.memory_space<vmem>>, vector<64x56xbf16>
    %c0_3 = arith.constant 0 : index
    %c0_4 = arith.constant 0 : index
    %2 = vector.load %arg3[%c0_3, %c0_4] : memref<1x56xbf16, #tpu.memory_space<vmem>>, vector<1x56xbf16>
    %cst = arith.constant dense<0.000000e+00> : vector<8x56xf32>
    %3 = tpu.matmul %0, %1, %cst {dimension_numbers = #tpu.dot_dimension_numbers<[1], [0], [0], [1], [0, 0, 1, 1], [], []>} : vector<8x64xbf16>, vector<64x56xbf16>, vector<8x56xf32> -> vector<8x56xf32>
    %4 = arith.extf %2 : vector<1x56xbf16> to vector<1x56xf32>
    %5 = vector.broadcast %4 : vector<1x56xf32> to vector<8x56xf32>
    %6 = arith.addf %3, %5 : vector<8x56xf32>
    %cst_5 = arith.constant 0.000000e+00 : f32
    %7 = vector.broadcast %cst_5 : f32 to vector<8x56xf32>
    %8 = arith.maximumf %6, %7 : vector<8x56xf32>
    %9 = arith.truncf %8 : vector<8x56xf32> to vector<8x56xbf16>
    %c0_6 = arith.constant 0 : index
    %c0_7 = arith.constant 0 : index
    %10 = vector.load %arg4[%c0_6, %c0_7] : memref<56x48xbf16, #tpu.memory_space<vmem>>, vector<56x48xbf16>
    %c0_8 = arith.constant 0 : index
    %c0_9 = arith.constant 0 : index
    %11 = vector.load %arg5[%c0_8, %c0_9] : memref<1x48xbf16, #tpu.memory_space<vmem>>, vector<1x48xbf16>
    %cst_10 = arith.constant dense<0.000000e+00> : vector<8x48xf32>
    %12 = tpu.matmul %9, %10, %cst_10 {dimension_numbers = #tpu.dot_dimension_numbers<[1], [0], [0], [1], [0, 0, 1, 1], [], []>} : vector<8x56xbf16>, vector<56x48xbf16>, vector<8x48xf32> -> vector<8x48xf32>
    %13 = arith.extf %11 : vector<1x48xbf16> to vector<1x48xf32>
    %14 = vector.broadcast %13 : vector<1x48xf32> to vector<8x48xf32>
    %15 = arith.addf %12, %14 : vector<8x48xf32>
    %cst_11 = arith.constant 0.000000e+00 : f32
    %16 = vector.broadcast %cst_11 : f32 to vector<8x48xf32>
    %17 = arith.maximumf %15, %16 : vector<8x48xf32>
    %18 = arith.truncf %17 : vector<8x48xf32> to vector<8x48xbf16>
    %c0_12 = arith.constant 0 : index
    %c0_13 = arith.constant 0 : index
    %19 = vector.load %arg6[%c0_12, %c0_13] : memref<48x40xbf16, #tpu.memory_space<vmem>>, vector<48x40xbf16>
    %c0_14 = arith.constant 0 : index
    %c0_15 = arith.constant 0 : index
    %20 = vector.load %arg7[%c0_14, %c0_15] : memref<1x40xbf16, #tpu.memory_space<vmem>>, vector<1x40xbf16>
    %cst_16 = arith.constant dense<0.000000e+00> : vector<8x40xf32>
    %21 = tpu.matmul %18, %19, %cst_16 {dimension_numbers = #tpu.dot_dimension_numbers<[1], [0], [0], [1], [0, 0, 1, 1], [], []>} : vector<8x48xbf16>, vector<48x40xbf16>, vector<8x40xf32> -> vector<8x40xf32>
    %22 = arith.extf %20 : vector<1x40xbf16> to vector<1x40xf32>
    %23 = vector.broadcast %22 : vector<1x40xf32> to vector<8x40xf32>
    %24 = arith.addf %21, %23 : vector<8x40xf32>
    %cst_17 = arith.constant 0.000000e+00 : f32
    %25 = vector.broadcast %cst_17 : f32 to vector<8x40xf32>
    %26 = arith.maximumf %24, %25 : vector<8x40xf32>
    %27 = arith.truncf %26 : vector<8x40xf32> to vector<8x40xbf16>
    %c0_18 = arith.constant 0 : index
    %c0_19 = arith.constant 0 : index
    %28 = vector.load %arg8[%c0_18, %c0_19] : memref<40x128xbf16, #tpu.memory_space<vmem>>, vector<40x128xbf16>
    %c0_20 = arith.constant 0 : index
    %c0_21 = arith.constant 0 : index
    %29 = vector.load %arg9[%c0_20, %c0_21] : memref<1x128xbf16, #tpu.memory_space<vmem>>, vector<1x128xbf16>
    %cst_22 = arith.constant dense<0.000000e+00> : vector<8x128xf32>
    %30 = tpu.matmul %27, %28, %cst_22 {dimension_numbers = #tpu.dot_dimension_numbers<[1], [0], [0], [1], [0, 0, 1, 1], [], []>} : vector<8x40xbf16>, vector<40x128xbf16>, vector<8x128xf32> -> vector<8x128xf32>
    %31 = arith.extf %29 : vector<1x128xbf16> to vector<1x128xf32>
    %32 = vector.broadcast %31 : vector<1x128xf32> to vector<8x128xf32>
    %33 = arith.addf %30, %32 : vector<8x128xf32>
    %34 = arith.truncf %33 : vector<8x128xf32> to vector<8x128xbf16>
    %c0_23 = arith.constant 0 : index
    %c0_24 = arith.constant 0 : index
    %35 = vector.load %arg10[%c0_23, %c0_24] : memref<8x128xbf16, #tpu.memory_space<vmem>>, vector<8x128xbf16>
    tpu.vector_store %arg10[%c0_23, %c0_24], %34 {strides = array<i32>} : memref<8x128xbf16, #tpu.memory_space<vmem>>, vector<8x128xbf16>,
    return
  }
  func.func @transform_0(%arg0: i32) -> (i32, i32) {
    %c0_i32 = arith.constant 0 : i32
    %c0_i32_0 = arith.constant 0 : i32
    return %arg0, %c0_i32 : i32, i32
  }
  func.func @transform_1(%arg0: i32) -> (i32, i32) {
    %c0_i32 = arith.constant 0 : i32
    %c0_i32_0 = arith.constant 0 : i32
    %c0_i32_1 = arith.constant 0 : i32
    return %c0_i32, %c0_i32_0 : i32, i32
  }
  func.func @transform_2(%arg0: i32) -> (i32, i32) {
    %c0_i32 = arith.constant 0 : i32
    %c0_i32_0 = arith.constant 0 : i32
    %c0_i32_1 = arith.constant 0 : i32
    return %c0_i32, %c0_i32_0 : i32, i32
  }
  func.func @transform_3(%arg0: i32) -> (i32, i32) {
    %c0_i32 = arith.constant 0 : i32
    %c0_i32_0 = arith.constant 0 : i32
    %c0_i32_1 = arith.constant 0 : i32
    return %c0_i32, %c0_i32_0 : i32, i32
  }
  func.func @transform_4(%arg0: i32) -> (i32, i32) {
    %c0_i32 = arith.constant 0 : i32
    %c0_i32_0 = arith.constant 0 : i32
    %c0_i32_1 = arith.constant 0 : i32
    return %c0_i32, %c0_i32_0 : i32, i32
  }
  func.func @transform_5(%arg0: i32) -> (i32, i32) {
    %c0_i32 = arith.constant 0 : i32
    %c0_i32_0 = arith.constant 0 : i32
    %c0_i32_1 = arith.constant 0 : i32
    return %c0_i32, %c0_i32_0 : i32, i32
  }
  func.func @transform_6(%arg0: i32) -> (i32, i32) {
    %c0_i32 = arith.constant 0 : i32
    %c0_i32_0 = arith.constant 0 : i32
    %c0_i32_1 = arith.constant 0 : i32
    return %c0_i32, %c0_i32_0 : i32, i32
  }
  func.func @transform_7(%arg0: i32) -> (i32, i32) {
    %c0_i32 = arith.constant 0 : i32
    %c0_i32_0 = arith.constant 0 : i32
    %c0_i32_1 = arith.constant 0 : i32
    return %c0_i32, %c0_i32_0 : i32, i32
  }
  func.func @transform_8(%arg0: i32) -> (i32, i32) {
    %c0_i32 = arith.constant 0 : i32
    %c0_i32_0 = arith.constant 0 : i32
    %c0_i32_1 = arith.constant 0 : i32
    return %c0_i32, %c0_i32_0 : i32, i32
  }
  func.func @transform_9(%arg0: i32) -> (i32, i32) {
    %c0_i32 = arith.constant 0 : i32
    %c0_i32_0 = arith.constant 0 : i32
    return %arg0, %c0_i32 : i32, i32
  }
}

</mosaic_0001>

<llo_original>
// kernel: general_linear_relu_encoder.1
$region0: #{general_linear_relu_encoder.1}
  #allocation0 [shape = 'u32[]', space=smem, size = 0x4, offset = 0x4, fixed_abs, tag = 'smem constant byte address 0x4 - core index']
  #allocation1 [shape = 'u32[144,128]{1,0:T(1,128)}', space=vmem, size = 0x12000, scoped, tag = 'internal scratch']
  %s0 = inlined_call_operand.vmem [shape: bf16[8,64], index: 0, kind: input, shape index: {}]
  %s1 = inlined_call_operand.vmem [shape: bf16[64,56], index: 1, kind: input, shape index: {}]
  %s2 = inlined_call_operand.vmem [shape: bf16[1,56], index: 2, kind: input, shape index: {}]
  %s3 = inlined_call_operand.vmem [shape: bf16[56,48], index: 3, kind: input, shape index: {}]
  %s4 = inlined_call_operand.vmem [shape: bf16[1,48], index: 4, kind: input, shape index: {}]
  %s5 = inlined_call_operand.vmem [shape: bf16[48,40], index: 5, kind: input, shape index: {}]
  %s6 = inlined_call_operand.vmem [shape: bf16[1,40], index: 6, kind: input, shape index: {}]
  %s7 = inlined_call_operand.vmem [shape: bf16[40,128], index: 7, kind: input, shape index: {}]
  %s8 = inlined_call_operand.vmem [shape: bf16[1,128], index: 8, kind: input, shape index: {}]
  %s9 = inlined_call_operand.hbm [shape: bf16[8,128], index: 9, kind: output, shape index: {}]
  %s10 = sld [smem:[#allocation0]]
  $region46: #{general_linear_relu_encoder.1} parent=0
    _
  %s12 = ssub.s32 1, %s10
  %s13 = scalar_select 0, %s12, %s10
  $region1: #{general_linear_relu_encoder.1} parent=0
    #allocation2 [shape = 'u8[2048]{0}', space=vmem, size = 0x800, scoped, tag = 'output window, operand 0, single buffered']
    #allocation3 [shape = 's32[1]{0}', space=sflag, size = 0x4, scoped, tag = 'scoped memory for general_linear_relu_encoder.1']
    %14 = vsyncpa [#allocation3], 0
    // Predicated region
    $region2: #{general_linear_relu_encoder.1} parent=1 // pred_check
      _
    $region3: #{general_linear_relu_encoder.1} parent=1 // pred_check_branch
      %16 = sbr.rel (0) target = $region5
    $region4: #{general_linear_relu_encoder.1} parent=1 // pred_region
      _
    $region5: #{general_linear_relu_encoder.1} parent=1 // pred_fallthru
      _
    // Predicated region
    $region6: #{general_linear_relu_encoder.1} parent=1 // pred_check
      _
    $region7: #{general_linear_relu_encoder.1} parent=1 // pred_check_branch
      %18 = sbr.rel (0) target = $region9
    $region8: #{general_linear_relu_encoder.1} parent=1 // pred_region
      _
    $region9: #{general_linear_relu_encoder.1} parent=1 // pred_fallthru
      _
    // Predicated region
    $region10: #{general_linear_relu_encoder.1} parent=1 // pred_check
      _
    $region11: #{general_linear_relu_encoder.1} parent=1 // pred_check_branch
      %20 = sbr.rel (0) target = $region13
    $region12: #{general_linear_relu_encoder.1} parent=1 // pred_region
      _
    $region13: #{general_linear_relu_encoder.1} parent=1 // pred_fallthru
      _
    // Predicated region
    $region14: #{general_linear_relu_encoder.1} parent=1 // pred_check
      _
    $region15: #{general_linear_relu_encoder.1} parent=1 // pred_check_branch
      %22 = sbr.rel (0) target = $region17
    $region16: #{general_linear_relu_encoder.1} parent=1 // pred_region
      _
    $region17: #{general_linear_relu_encoder.1} parent=1 // pred_fallthru
      _
    // Predicated region
    $region18: #{general_linear_relu_encoder.1} parent=1 // pred_check
      _
    $region19: #{general_linear_relu_encoder.1} parent=1 // pred_check_branch
      %24 = sbr.rel (0) target = $region21
    $region20: #{general_linear_relu_encoder.1} parent=1 // pred_region
      _
    $region21: #{general_linear_relu_encoder.1} parent=1 // pred_fallthru
      _
    // Predicated region
    $region22: #{general_linear_relu_encoder.1} parent=1 // pred_check
      _
    $region23: #{general_linear_relu_encoder.1} parent=1 // pred_check_branch
      %26 = sbr.rel (0) target = $region25
    $region24: #{general_linear_relu_encoder.1} parent=1 // pred_region
      _
    $region25: #{general_linear_relu_encoder.1} parent=1 // pred_fallthru
      _
    // Predicated region
    $region26: #{general_linear_relu_encoder.1} parent=1 // pred_check
      _
    $region27: #{general_linear_relu_encoder.1} parent=1 // pred_check_branch
      %28 = sbr.rel (0) target = $region29
    $region28: #{general_linear_relu_encoder.1} parent=1 // pred_region
      _
    $region29: #{general_linear_relu_encoder.1} parent=1 // pred_fallthru
      _
    // Predicated region
    $region30: #{general_linear_relu_encoder.1} parent=1 // pred_check
      _
    $region31: #{general_linear_relu_encoder.1} parent=1 // pred_check_branch
      %30 = sbr.rel (0) target = $region33
    $region32: #{general_linear_relu_encoder.1} parent=1 // pred_region
      _
    $region33: #{general_linear_relu_encoder.1} parent=1 // pred_fallthru
      _
    // Predicated region
    $region34: #{general_linear_relu_encoder.1} parent=1 // pred_check
      _
    $region35: #{general_linear_relu_encoder.1} parent=1 // pred_check_branch
      %32 = sbr.rel (0) target = $region37
    $region36: #{general_linear_relu_encoder.1} parent=1 // pred_region
      _
    $region37: #{general_linear_relu_encoder.1} parent=1 // pred_fallthru
      _
    %v34 = vld [vmem:[%s0] sm:$0xf]
    %v35 = vld [vmem:[%s1] sm:$0xf]
    %v36 = vld [vmem:[%s1 + $0x4] sm:$0xf]
    %v37 = vld [vmem:[%s1 + $0x8] sm:$0xf]
    %v38 = vld [vmem:[%s1 + $0xc] sm:$0xf]
    %v39 = vld [vmem:[%s1 + $0x10] sm:$0xf]
    %v40 = vld [vmem:[%s1 + $0x14] sm:$0xf]
    %v41 = vld [vmem:[%s1 + $0x18] sm:$0xf]
    %v42 = vld [vmem:[%s1 + $0x1c] sm:$0xf]
    %v43 = vld [vmem:[%s2] sm:$0x1]
    %v44 = vunpack.c.l.bf16 %v43
    %v45 = vlaneseq
    %v46 = vshrl.u32 %v45, 7
    %v47 = vsub.s32 0, %v46
    %v48 = vrot.slane %v44, %v47
    %v57 = vunpack.c.l.b16 %v35
    %v58 = vunpack.c.l.b16 %v36
    %v59 = vunpack.c.l.b16 %v37
    %v60 = vunpack.c.l.b16 %v38
    %v61 = vunpack.c.l.b16 %v39
    %v62 = vunpack.c.l.b16 %v40
    %v63 = vunpack.c.l.b16 %v41
    %v64 = vunpack.c.l.b16 %v42
    %v65 = vpack.c.b16 %v58, %v57
    %v66 = vpack.c.b16 %v60, %v59
    %v67 = vpack.c.b16 %v62, %v61
    %v68 = vpack.c.b16 %v64, %v63
    %vm73 = vcmask 523264
    %v75 = vsel %vm73, %v34, 0
    %77 = vmatprep.subr.bf16.mxu0 0
    %78 = vmatpush1.bf16.msra.mxu0 %v65
    %79 = vmatprep.subr.bf16.mxu0 0
    %80 = vmatpush1.bf16.msra.mxu0 %v66
    %81 = vmatprep.subr.bf16.mxu0 0
    %82 = vmatpush1.bf16.msra.mxu0 %v67
    %83 = vmatprep.subr.bf16.mxu0 0
    %84 = vmatpush1.bf16.msra.mxu0 %v68
    %85 = vmatprep.subr.bf16.mxu0 0
    %86 = vmatpush1.bf16.msra.mxu0 0
    %87 = vmatprep.subr.bf16.mxu0 0
    %88 = vmatpush1.bf16.msra.mxu0 0
    %89 = vmatprep.subr.bf16.mxu0 0
    %90 = vmatpush1.bf16.msra.mxu0 0
    %91 = vmatprep.subr.bf16.mxu0 0
    %92 = vmatpush1.bf16.msra.mxu0 0
    %93 = vmatprep.subr.bf16.mxu0 0
    %94 = vmatpush1.bf16.msra.mxu0 0
    %95 = vmatprep.subr.bf16.mxu0 0
    %96 = vmatpush1.bf16.msra.mxu0 0
    %97 = vmatprep.subr.bf16.mxu0 0
    %98 = vmatpush1.bf16.msra.mxu0 0
    %99 = vmatprep.subr.bf16.mxu0 0
    %100 = vmatpush1.bf16.msra.mxu0 0
    %101 = vmatprep.subr.bf16.mxu0 0
    %102 = vmatpush1.bf16.msra.mxu0 0
    %103 = vmatprep.subr.bf16.mxu0 0
    %104 = vmatpush1.bf16.msra.mxu0 0
    %105 = vmatprep.subr.bf16.mxu0 0
    %106 = vmatpush1.bf16.msra.mxu0 0
    %107 = vmatprep.subr.bf16.mxu0 0
    %108 = vmatpush1.bf16.msra.mxu0 0
    %109 = vmatprep.mubr.bf16.mxu0 0
    %110 = vmatmul.mubr.bf16.gmra.mrb[0].mxu0 %v75
    %v111 = vpop.f32.mrb[0].mxu0
    %v112 = vadd.f32 %v48, %v111
    %v113 = vpop.f32.mrb[0].mxu0
    %v114 = vpop.f32.mrb[0].mxu0
    %v115 = vpop.f32.mrb[0].mxu0
    %116 = vdwg.mxu0
    %v117 = vmax.f32 %v112, 0.0
    %v118 = vpack.c.bf16 %v117, %v117
    %v119 = vld [vmem:[%s3] sm:$0xf]
    %v120 = vld [vmem:[%s3 + $0x4] sm:$0xf]
    %v121 = vld [vmem:[%s3 + $0x8] sm:$0xf]
    %v122 = vld [vmem:[%s3 + $0xc] sm:$0xf]
    %v123 = vld [vmem:[%s3 + $0x10] sm:$0xf]
    %v124 = vld [vmem:[%s3 + $0x14] sm:$0xf]
    %v125 = vld [vmem:[%s3 + $0x18] sm:$0xf]
    %v126 = vld [vmem:[%s4] sm:$0x1]
    %v127 = vunpack.c.l.bf16 %v126
    %v128 = vlaneseq
    %v129 = vshrl.u32 %v128, 7
    %v130 = vsub.s32 0, %v129
    %v131 = vrot.slane %v127, %v130
    %v139 = vunpack.c.l.b16 %v119
    %v140 = vunpack.c.l.b16 %v120
    %v141 = vunpack.c.l.b16 %v121
    %v142 = vunpack.c.l.b16 %v122
    %v143 = vunpack.c.l.b16 %v123
    %v144 = vunpack.c.l.b16 %v124
    %v145 = vunpack.c.l.b16 %v125
    %v146 = vpack.c.b16 %v140, %v139
    %v147 = vpack.c.b16 %v142, %v141
    %v148 = vpack.c.b16 %v144, %v143
    %v149 = vpack.c.b16 %v145, %v145
    %vm153 = vcmask 457728
    %v155 = vsel %vm153, %v118, 0
    %vm157 = vcmask 1043456
    %v159 = vsel %vm157, %v149, 0
    %161 = vmatprep.subr.bf16.mxu0 0
    %162 = vmatpush1.bf16.msra.mxu0 %v146
    %163 = vmatprep.subr.bf16.mxu0 0
    %164 = vmatpush1.bf16.msra.mxu0 %v147
    %165 = vmatprep.subr.bf16.mxu0 0
    %166 = vmatpush1.bf16.msra.mxu0 %v148
    %167 = vmatprep.subr.bf16.mxu0 0
    %168 = vmatpush1.bf16.msra.mxu0 %v159
    %169 = vmatprep.subr.bf16.mxu0 0
    %170 = vmatpush1.bf16.msra.mxu0 0
    %171 = vmatprep.subr.bf16.mxu0 0
    %172 = vmatpush1.bf16.msra.mxu0 0
    %173 = vmatprep.subr.bf16.mxu0 0
    %174 = vmatpush1.bf16.msra.mxu0 0
    %175 = vmatprep.subr.bf16.mxu0 0
    %176 = vmatpush1.bf16.msra.mxu0 0
    %177 = vmatprep.subr.bf16.mxu0 0
    %178 = vmatpush1.bf16.msra.mxu0 0
    %179 = vmatprep.subr.bf16.mxu0 0
    %180 = vmatpush1.bf16.msra.mxu0 0
    %181 = vmatprep.subr.bf16.mxu0 0
    %182 = vmatpush1.bf16.msra.mxu0 0
    %183 = vmatprep.subr.bf16.mxu0 0
    %184 = vmatpush1.bf16.msra.mxu0 0
    %185 = vmatprep.subr.bf16.mxu0 0
    %186 = vmatpush1.bf16.msra.mxu0 0
    %187 = vmatprep.subr.bf16.mxu0 0
    %188 = vmatpush1.bf16.msra.mxu0 0
    %189 = vmatprep.subr.bf16.mxu0 0
    %190 = vmatpush1.bf16.msra.mxu0 0
    %191 = vmatprep.subr.bf16.mxu0 0
    %192 = vmatpush1.bf16.msra.mxu0 0
    %193 = vmatprep.mubr.bf16.mxu0 0
    %194 = vmatmul.mubr.bf16.gmra.mrb[0].mxu0 %v155
    %v195 = vpop.f32.mrb[0].mxu0
    %v196 = vadd.f32 %v131, %v195
    %v197 = vpop.f32.mrb[0].mxu0
    %v198 = vpop.f32.mrb[0].mxu0
    %v199 = vpop.f32.mrb[0].mxu0
    %200 = vdwg.mxu0
    %v201 = vmax.f32 %v196, 0.0
    %v202 = vpack.c.bf16 %v201, %v201
    %v203 = vld [vmem:[%s5] sm:$0xf]
    %v204 = vld [vmem:[%s5 + $0x4] sm:$0xf]
    %v205 = vld [vmem:[%s5 + $0x8] sm:$0xf]
    %v206 = vld [vmem:[%s5 + $0xc] sm:$0xf]
    %v207 = vld [vmem:[%s5 + $0x10] sm:$0xf]
    %v208 = vld [vmem:[%s5 + $0x14] sm:$0xf]
    %v209 = vld [vmem:[%s6] sm:$0x1]
    %v210 = vunpack.c.l.bf16 %v209
    %v211 = vlaneseq
    %v212 = vshrl.u32 %v211, 7
    %v213 = vsub.s32 0, %v212
    %v214 = vrot.slane %v210, %v213
    %v221 = vunpack.c.l.b16 %v203
    %v222 = vunpack.c.l.b16 %v204
    %v223 = vunpack.c.l.b16 %v205
    %v224 = vunpack.c.l.b16 %v206
    %v225 = vunpack.c.l.b16 %v207
    %v226 = vunpack.c.l.b16 %v208
    %v227 = vpack.c.b16 %v222, %v221
    %v228 = vpack.c.b16 %v224, %v223
    %v229 = vpack.c.b16 %v226, %v225
    %vm233 = vcmask 392192
    %v235 = vsel %vm233, %v202, 0
    %237 = vmatprep.subr.bf16.mxu0 0
    %238 = vmatpush1.bf16.msra.mxu0 %v227
    %239 = vmatprep.subr.bf16.mxu0 0
    %240 = vmatpush1.bf16.msra.mxu0 %v228
    %241 = vmatprep.subr.bf16.mxu0 0
    %242 = vmatpush1.bf16.msra.mxu0 %v229
    %243 = vmatprep.subr.bf16.mxu0 0
    %244 = vmatpush1.bf16.msra.mxu0 0
    %245 = vmatprep.subr.bf16.mxu0 0
    %246 = vmatpush1.bf16.msra.mxu0 0
    %247 = vmatprep.subr.bf16.mxu0 0
    %248 = vmatpush1.bf16.msra.mxu0 0
    %249 = vmatprep.subr.bf16.mxu0 0
    %250 = vmatpush1.bf16.msra.mxu0 0
    %251 = vmatprep.subr.bf16.mxu0 0
    %252 = vmatpush1.bf16.msra.mxu0 0
    %253 = vmatprep.subr.bf16.mxu0 0
    %254 = vmatpush1.bf16.msra.mxu0 0
    %255 = vmatprep.subr.bf16.mxu0 0
    %256 = vmatpush1.bf16.msra.mxu0 0
    %257 = vmatprep.subr.bf16.mxu0 0
    %258 = vmatpush1.bf16.msra.mxu0 0
    %259 = vmatprep.subr.bf16.mxu0 0
    %260 = vmatpush1.bf16.msra.mxu0 0
    %261 = vmatprep.subr.bf16.mxu0 0
    %262 = vmatpush1.bf16.msra.mxu0 0
    %263 = vmatprep.subr.bf16.mxu0 0
    %264 = vmatpush1.bf16.msra.mxu0 0
    %265 = vmatprep.subr.bf16.mxu0 0
    %266 = vmatpush1.bf16.msra.mxu0 0
    %267 = vmatprep.subr.bf16.mxu0 0
    %268 = vmatpush1.bf16.msra.mxu0 0
    %269 = vmatprep.mubr.bf16.mxu0 0
    %270 = vmatmul.mubr.bf16.gmra.mrb[0].mxu0 %v235
    %v271 = vpop.f32.mrb[0].mxu0
    %v272 = vadd.f32 %v214, %v271
    %v273 = vpop.f32.mrb[0].mxu0
    %v274 = vpop.f32.mrb[0].mxu0
    %v275 = vpop.f32.mrb[0].mxu0
    %276 = vdwg.mxu0
    %v277 = vmax.f32 %v272, 0.0
    %v278 = vpack.c.bf16 %v277, %v277
    %v279 = vld [vmem:[%s7] sm:$0xf]
    %v280 = vld [vmem:[%s7 + $0x4] sm:$0xf]
    %v281 = vld [vmem:[%s7 + $0x8] sm:$0xf]
    %v282 = vld [vmem:[%s7 + $0xc] sm:$0xf]
    %v283 = vld [vmem:[%s7 + $0x10] sm:$0xf]
    %v284 = vld [vmem:[%s8] sm:$0x1]
    %v285 = vunpack.c.l.bf16 %v284
    %v286 = vlaneseq
    %v287 = vshrl.u32 %v286, 7
    %v288 = vsub.s32 0, %v287
    %v289 = vrot.slane %v285, %v288
    %v295 = vunpack.c.l.b16 %v279
    %v296 = vunpack.c.l.b16 %v280
    %v297 = vunpack.c.l.b16 %v281
    %v298 = vunpack.c.l.b16 %v282
    %v299 = vunpack.c.l.b16 %v283
    %v300 = vpack.c.b16 %v296, %v295
    %v301 = vpack.c.b16 %v298, %v297
    %v302 = vpack.c.b16 %v299, %v299
    %vm305 = vcmask 326656
    %v307 = vsel %vm305, %v278, 0
    %v310 = vsel %vm157, %v302, 0
    %312 = vmatprep.subr.bf16.mxu0 0
    %313 = vmatpush1.bf16.msra.mxu0 %v300
    %314 = vmatprep.subr.bf16.mxu0 0
    %315 = vmatpush1.bf16.msra.mxu0 %v301
    %316 = vmatprep.subr.bf16.mxu0 0
    %317 = vmatpush1.bf16.msra.mxu0 %v310
    %318 = vmatprep.subr.bf16.mxu0 0
    %319 = vmatpush1.bf16.msra.mxu0 0
    %320 = vmatprep.subr.bf16.mxu0 0
    %321 = vmatpush1.bf16.msra.mxu0 0
    %322 = vmatprep.subr.bf16.mxu0 0
    %323 = vmatpush1.bf16.msra.mxu0 0
    %324 = vmatprep.subr.bf16.mxu0 0
    %325 = vmatpush1.bf16.msra.mxu0 0
    %326 = vmatprep.subr.bf16.mxu0 0
    %327 = vmatpush1.bf16.msra.mxu0 0
    %328 = vmatprep.subr.bf16.mxu0 0
    %329 = vmatpush1.bf16.msra.mxu0 0
    %330 = vmatprep.subr.bf16.mxu0 0
    %331 = vmatpush1.bf16.msra.mxu0 0
    %332 = vmatprep.subr.bf16.mxu0 0
    %333 = vmatpush1.bf16.msra.mxu0 0
    %334 = vmatprep.subr.bf16.mxu0 0
    %335 = vmatpush1.bf16.msra.mxu0 0
    %336 = vmatprep.subr.bf16.mxu0 0
    %337 = vmatpush1.bf16.msra.mxu0 0
    %338 = vmatprep.subr.bf16.mxu0 0
    %339 = vmatpush1.bf16.msra.mxu0 0
    %340 = vmatprep.subr.bf16.mxu0 0
    %341 = vmatpush1.bf16.msra.mxu0 0
    %342 = vmatprep.subr.bf16.mxu0 0
    %343 = vmatpush1.bf16.msra.mxu0 0
    %344 = vmatprep.mubr.bf16.mxu0 0
    %345 = vmatmul.mubr.bf16.gmra.mrb[0].mxu0 %v307
    %v346 = vpop.f32.mrb[0].mxu0
    %v347 = vadd.f32 %v289, %v346
    %v348 = vpop.f32.mrb[0].mxu0
    %v349 = vpop.f32.mrb[0].mxu0
    %v350 = vpop.f32.mrb[0].mxu0
    %351 = vdwg.mxu0
    %v352 = vpack.c.bf16 %v347, %v347
    %353 = vst [vmem:[#allocation2] sm:$0xf] %v352
    // Predicated region
    $region38: #{general_linear_relu_encoder.1} parent=1 // pred_check
      _
    $region39: #{general_linear_relu_encoder.1} parent=1 // pred_check_branch
      %355 = sbr.rel (0) target = $region41
    $region40: #{general_linear_relu_encoder.1} parent=1 // pred_region
      %s357 = ssub.s32 64, 64
      %358 = vsyncadd [#allocation3], %s357
      %s360 = sshll.u32 [#allocation2], 4
      %s361 = int_to_ptr.vmem [resolvable:$true] %s360
      %363 = dma.vmem_to_hbm [thread:$0]  %s361, 64, %s9, [#allocation3]
    $region41: #{general_linear_relu_encoder.1} parent=1 // pred_fallthru
      _
    // Predicated region
    $region42: #{general_linear_relu_encoder.1} parent=1 // pred_check
      _
    $region43: #{general_linear_relu_encoder.1} parent=1 // pred_check_branch
      %365 = sbr.rel (0) target = $region45
    $region44: #{general_linear_relu_encoder.1} parent=1 // pred_region
      %366 = dma.done [#allocation3], 64
    $region45: #{general_linear_relu_encoder.1} parent=1 // pred_fallthru
      _
    %367 = vsyncpa [#allocation3], 1

</llo_original>
